<compile_context>
chip_gen: v6e
topology: v6e:2x2x1
jax: 0.10.0
libtpu: 0.0.40
codegen_flags: <defaults>
</compile_context>

<pallas_src>
import functools

import jax
import jax.numpy as jnp
from jax.experimental import pallas as pl
from jax.experimental.pallas import tpu as pltpu


def _cross_entropy_kernel(logits_ref, targets_ref, loss_ref, *, true_b, block_b):
    # logits_ref:  [TB, C] float (f32 or bf16) tile in VMEM
    # targets_ref: [TB, 1]  int32 tile in VMEM
    # loss_ref:    [1, 1]   float32 accumulator, resident in SMEM across the grid
    pid = pl.program_id(0)

    @pl.when(pid == 0)
    def _():
        loss_ref[0, 0] = jnp.float32(0.0)

    logits = logits_ref[...].astype(jnp.float32)  # upcast per tile (bf16-in-HBM OK)
    tgt = targets_ref[...]                        # [TB, 1] int32
    tb, c = logits.shape

    # numerically-stable log-sum-exp along the class axis
    m = jnp.max(logits, axis=-1, keepdims=True)                 # [TB, 1]
    shifted = logits - m                                        # [TB, C]
    sumexp = jnp.sum(jnp.exp(shifted), axis=-1, keepdims=True)  # [TB, 1]
    lse = m + jnp.log(sumexp)                                   # [TB, 1]

    # gather logit at the target class: fused select+reduce (no f32 one-hot temp)
    col_ids = jax.lax.broadcasted_iota(jnp.int32, (tb, c), 1)
    picked = jnp.sum(jnp.where(col_ids == tgt, logits, 0.0), axis=-1, keepdims=True)

    per_example = lse - picked                                  # [TB, 1]

    # mask rows past the true batch size (padded rows of the last partial tile)
    row_ids = jax.lax.broadcasted_iota(jnp.int32, (tb, 1), 0) + pid * block_b
    per_example = jnp.where(row_ids < true_b, per_example, 0.0)

    # accumulate the global mean contribution of this tile
    loss_ref[0, 0] += jnp.sum(per_example) * (1.0 / true_b)


def cross_entropy_loss(logits, targets, *, block_rows=None,
                       vmem_tile_budget_bytes=40 * 1024 * 1024):
    """Mean cross-entropy, equivalent to torch.nn.CrossEntropyLoss()(logits, targets).

    Streams the [B, C] logits through VMEM in (TB, C) batch tiles so it scales to
    LLM-sized class counts; logits may be float32 or bfloat16.
    """
    B, C = logits.shape
    itemsize = jnp.dtype(logits.dtype).itemsize

    if block_rows is None:
        # Double-buffered (logits + targets) tile must fit the VMEM budget
        # (kept well under the 64 MiB physical VMEM of v7x).
        per_row_bytes = C * itemsize + 4
        tb = vmem_tile_budget_bytes // (2 * per_row_bytes)
        tb = max(8, (tb // 8) * 8)
        tb = min(tb, 1024)
    else:
        tb = max(8, (block_rows // 8) * 8)
    if tb >= B:
        tb = B  # single block == full array dims (always layout-legal)
    # else: tb is a multiple of 8, satisfying the (8, 128) sublane constraint

    grid = (pl.cdiv(B, tb),)
    targets_2d = targets.reshape(B, 1).astype(jnp.int32)

    kernel = functools.partial(_cross_entropy_kernel, true_b=B, block_b=tb)

    cost = pl.CostEstimate(
        flops=5 * B * C,
        transcendentals=B * C + B,
        bytes_accessed=B * C * itemsize + B * 4 + 4,
    )

    out = pl.pallas_call(
        kernel,
        out_shape=jax.ShapeDtypeStruct((1, 1), jnp.float32),
        grid=grid,
        in_specs=[
            pl.BlockSpec((tb, C), lambda i: (i, 0)),  # streamed logits tile
            pl.BlockSpec((tb, 1), lambda i: (i, 0)),  # matching targets tile
        ],
        # scalar accumulator lives in SMEM, resident across all grid steps
        out_specs=pl.BlockSpec(memory_space=pltpu.SMEM),
        compiler_params=pltpu.CompilerParams(
            dimension_semantics=("arbitrary",),       # reduction axis
            vmem_limit_bytes=48 * 1024 * 1024,
        ),
        cost_estimate=cost,
    )(logits, targets_2d)
    return out[0, 0]


def environment_agnostic_loss(logits, labels):
    """JAX/Pallas equivalent of EnvironmentAgnosticLossFunction.forward.

    labels is a (targets, environments) pair; environments is ignored.
    """
    targets, environments = labels
    del environments  # environment-agnostic: drop it, exactly as the nn.Module does
    return cross_entropy_loss(logits, targets)


def _reference_ce(logits, targets):
    B = logits.shape[0]
    return jnp.mean(
        jax.nn.logsumexp(logits.astype(jnp.float32), axis=-1)
        - logits.astype(jnp.float32)[jnp.arange(B), targets]
    )


if __name__ == "__main__":
    key = jax.random.PRNGKey(0)
    k_logits, k_targets, k_env, k_logits2, k_targets2 = jax.random.split(key, 5)

    # --- case 1: small shapes consistent with a classification loss head ----
    B, C = 8, 32
    logits = jax.random.normal(k_logits, (B, C), dtype=jnp.float32)
    targets = jax.random.randint(k_targets, (B,), 0, C, dtype=jnp.int32)
    environments = jax.random.randint(k_env, (B,), 0, 4, dtype=jnp.int32)  # ignored

    loss = environment_agnostic_loss(logits, (targets, environments))
    loss = jax.block_until_ready(loss)
    ref = _reference_ce(logits, targets)
    assert jnp.allclose(loss, ref, atol=1e-5, rtol=1e-5), (loss, ref)

    # --- case 2: multi-tile grid with a padded last tile (B not divisible) ---
    B2, C2 = 20, 128
    logits2 = jax.random.normal(k_logits2, (B2, C2), dtype=jnp.float32)
    targets2 = jax.random.randint(k_targets2, (B2,), 0, C2, dtype=jnp.int32)
    loss2 = cross_entropy_loss(logits2, targets2, block_rows=8)  # grid=(3,), masked tail
    loss2 = jax.block_until_ready(loss2)
    ref2 = _reference_ce(logits2, targets2)
    assert jnp.allclose(loss2, ref2, atol=1e-5, rtol=1e-5), (loss2, ref2)

    print("KERNEL_OK")
</pallas_src>

<mosaic_0001>
module attributes {stable_mosaic.version = 11 : i64} {
  func.func @_cross_entropy_kernel(%arg0: i32, %arg1: memref<8x32xf32, #tpu.memory_space<vmem>>, %arg2: memref<8x1xi32, #tpu.memory_space<vmem>>, %arg3: memref<1x1xf32, #tpu.memory_space<smem>>) attributes {dimension_semantics = [#tpu.dimension_semantics<arbitrary>], iteration_bounds = array<i64: 1>, scalar_prefetch = 0 : i64, scratch_operands = 0 : i64, tpu.core_type = #tpu.core_type<tc>, window_params = [{transform_indices = @transform_0, window_bounds = array<i64: 8, 32>}, {transform_indices = @transform_1, window_bounds = array<i64: 8, 1>}, {transform_indices = @transform_2, window_bounds = array<i64: 1, 1>}]} {
    %c0_i32 = arith.constant 0 : i32
    %0 = arith.cmpi eq, %arg0, %c0_i32 : i32
    %1 = arith.extui %0 : i1 to i32
    %c0_i32_0 = arith.constant 0 : i32
    %2 = arith.cmpi ne, %1, %c0_i32_0 : i32
    scf.if %2 {
      %cst_15 = arith.constant 0.000000e+00 : f32
      %c0_16 = arith.constant 0 : index
      %c0_17 = arith.constant 0 : index
      %38 = memref.load %arg3[%c0_16, %c0_17] : memref<1x1xf32, #tpu.memory_space<smem>>
      memref.store %cst_15, %arg3[%c0_16, %c0_17] : memref<1x1xf32, #tpu.memory_space<smem>>
    } else {
    }
    %c0 = arith.constant 0 : index
    %c0_1 = arith.constant 0 : index
    %3 = vector.load %arg1[%c0, %c0_1] : memref<8x32xf32, #tpu.memory_space<vmem>>, vector<8x32xf32>
    %c0_2 = arith.constant 0 : index
    %c0_3 = arith.constant 0 : index
    %4 = vector.load %arg2[%c0_2, %c0_3] : memref<8x1xi32, #tpu.memory_space<vmem>>, vector<8x1xi32>
    %cst = arith.constant dense<0xFF800000> : vector<8xf32>
    %5 = vector.multi_reduction <maximumf>, %3, %cst [1] : vector<8x32xf32> to vector<8xf32>
    %6 = vector.shape_cast %5 : vector<8xf32> to vector<8x1xf32>
    %7 = vector.broadcast %6 : vector<8x1xf32> to vector<8x32xf32>
    %8 = arith.subf %3, %7 : vector<8x32xf32>
    %9 = math.exp %8 : vector<8x32xf32>
    %cst_4 = arith.constant dense<0.000000e+00> : vector<8xf32>
    %10 = vector.multi_reduction <add>, %9, %cst_4 [1] : vector<8x32xf32> to vector<8xf32>
    %11 = vector.shape_cast %10 : vector<8xf32> to vector<8x1xf32>
    %12 = math.log %11 : vector<8x1xf32>
    %13 = arith.addf %6, %12 : vector<8x1xf32>
    %14 = tpu.iota {dimensions = array<i32: 1>} : vector<8x32xi32>
    %15 = vector.broadcast %4 : vector<8x1xi32> to vector<8x32xi32>
    %16 = arith.cmpi eq, %14, %15 : vector<8x32xi32>
    %cst_5 = arith.constant 0.000000e+00 : f32
    %17 = vector.broadcast %cst_5 : f32 to vector<8x32xf32>
    %18 = arith.select %16, %3, %17 : vector<8x32xi1>, vector<8x32xf32>
    %cst_6 = arith.constant dense<0.000000e+00> : vector<8xf32>
    %19 = vector.multi_reduction <add>, %18, %cst_6 [1] : vector<8x32xf32> to vector<8xf32>
    %20 = vector.shape_cast %19 : vector<8xf32> to vector<8x1xf32>
    %21 = arith.subf %13, %20 : vector<8x1xf32>
    %22 = tpu.iota {dimensions = array<i32: 0>} : vector<8x1xi32>
    %c8_i32 = arith.constant 8 : i32
    %23 = arith.muli %arg0, %c8_i32 : i32
    %24 = vector.broadcast %23 : i32 to vector<8x1xi32>
    %25 = arith.addi %22, %24 : vector<8x1xi32>
    %c8_i32_7 = arith.constant 8 : i32
    %26 = vector.broadcast %c8_i32_7 : i32 to vector<8x1xi32>
    %27 = arith.cmpi slt, %25, %26 : vector<8x1xi32>
    %cst_8 = arith.constant 0.000000e+00 : f32
    %28 = vector.broadcast %cst_8 : f32 to vector<8x1xf32>
    %29 = arith.select %27, %21, %28 : vector<8x1xi1>, vector<8x1xf32>
    %c0_9 = arith.constant 0 : index
    %c0_10 = arith.constant 0 : index
    %30 = memref.load %arg3[%c0_9, %c0_10] : memref<1x1xf32, #tpu.memory_space<smem>>
    %31 = vector.shape_cast %29 : vector<8x1xf32> to vector<1x8x1xf32>
    %cst_11 = arith.constant dense<0.000000e+00> : vector<1xf32>
    %32 = vector.multi_reduction <add>, %31, %cst_11 [1, 2] : vector<1x8x1xf32> to vector<1xf32>
    %33 = vector.shape_cast %32 : vector<1xf32> to vector<1x1x1xf32>
    %34 = vector.extract %33[0, 0, 0] : f32 from vector<1x1x1xf32>
    %cst_12 = arith.constant 1.250000e-01 : f32
    %35 = arith.mulf %34, %cst_12 : f32
    %36 = arith.addf %30, %35 : f32
    %c0_13 = arith.constant 0 : index
    %c0_14 = arith.constant 0 : index
    %37 = memref.load %arg3[%c0_13, %c0_14] : memref<1x1xf32, #tpu.memory_space<smem>>
    memref.store %36, %arg3[%c0_13, %c0_14] : memref<1x1xf32, #tpu.memory_space<smem>>
    return
  }
  func.func @transform_0(%arg0: i32) -> (i32, i32) {
    %c0_i32 = arith.constant 0 : i32
    %c0_i32_0 = arith.constant 0 : i32
    return %arg0, %c0_i32 : i32, i32
  }
  func.func @transform_1(%arg0: i32) -> (i32, i32) {
    %c0_i32 = arith.constant 0 : i32
    %c0_i32_0 = arith.constant 0 : i32
    return %arg0, %c0_i32 : i32, i32
  }
  func.func @transform_2(%arg0: i32) -> (i32, i32) {
    %c0_i32 = arith.constant 0 : i32
    %c0_i32_0 = arith.constant 0 : i32
    %c0_i32_1 = arith.constant 0 : i32
    return %c0_i32, %c0_i32_0 : i32, i32
  }
}

</mosaic_0001>

<llo_original>
// kernel: tpu_custom_call.1
$region0: #{tpu_custom_call.1}
  #allocation0 [shape = 'u32[]', space=smem, size = 0x4, offset = 0x4, fixed_abs, tag = 'smem constant byte address 0x4 - core index']
  #allocation1 [shape = 'u32[144,128]{1,0:T(1,128)}', space=vmem, size = 0x12000, scoped, tag = 'internal scratch']
  %s0 = inlined_call_operand.vmem [shape: f32[8,32], index: 0, kind: input, shape index: {}]
  %s1 = inlined_call_operand.vmem [shape: s32[8,1], index: 1, kind: input, shape index: {}]
  %s2 = inlined_call_operand.hbm [shape: f32[1,1], index: 2, kind: output, shape index: {}]
  %s3 = sld [smem:[#allocation0]]
  $region22: #{tpu_custom_call.1} parent=0
    _
  %s5 = ssub.s32 1, %s3
  %s6 = scalar_select 0, %s5, %s3
  $region1: #{tpu_custom_call.1} parent=0
    #allocation2 [shape = 'u8[512]{0}', space=smem, size = 0x200, scoped, tag = 'output window, operand 0, single buffered']
    #allocation3 [shape = 's32[1]{0}', space=sflag, size = 0x4, scoped, tag = 'scoped memory for tpu_custom_call.1']
    %7 = vsyncpa [#allocation3], 0
    // Predicated region
    $region2: #{tpu_custom_call.1} parent=1 // pred_check
      _
    $region3: #{tpu_custom_call.1} parent=1 // pred_check_branch
      %9 = sbr.rel (0) target = $region5
    $region4: #{tpu_custom_call.1} parent=1 // pred_region
      _
    $region5: #{tpu_custom_call.1} parent=1 // pred_fallthru
      _
    // Predicated region
    $region6: #{tpu_custom_call.1} parent=1 // pred_check
      _
    $region7: #{tpu_custom_call.1} parent=1 // pred_check_branch
      %11 = sbr.rel (0) target = $region9
    $region8: #{tpu_custom_call.1} parent=1 // pred_region
      _
    $region9: #{tpu_custom_call.1} parent=1 // pred_fallthru
      _
    %p12 = scmp.eq.s32.totalorder 0, 0
    // Predicated region
    $region10: #{tpu_custom_call.1} parent=1 // pred_check
      %p13 = pneg %p12
    $region11: #{tpu_custom_call.1} parent=1 // pred_check_branch
      %15 = sbr.rel (%p13) target = $region13
    $region12: #{tpu_custom_call.1} parent=1 // pred_region
      %s16 = scalar_lea.smem [#allocation2], 0
      %17 = sst [smem:[%s16]] 0.0
    $region13: #{tpu_custom_call.1} parent=1 // pred_fallthru
      _
    %v18 = vld [vmem:[%s0] sm:$0xff]
    %v19 = vld [vmem:[%s1] sm:$0xff]
    %vm20 = vcmask 261120
    %v21 = vsel %vm20, %v18, -inf
    %22 = vmax.xlane.f32.xlu0 %v21
    %v23 = vpop.xlane.xlu0 %22
    %v24 = vsub.f32 %v18, %v23
    %v25 = vmul.f32 %v24, 1.442695
    %v26 = vpow.pop %v25
    %v27 = vsel %vm20, %v26, 0.0
    %28 = vadd.xlane.f32.xlu0 %v27
    %v29 = vpop.xlane.xlu0 %28
    %v30 = vlog2.pop %v29
    %v31 = vmul.f32 %v30, 0.6931472
    %v32 = vadd.f32 %v23, %v31
    %v33 = vlaneseq
    %v34 = vand.u32 %v33, 127
    %35 = vset.pattern.permute.xlu0 0
    %36 = vperm.xlu0 %35, %v19
    %v37 = vpop.permute.xlu0 %36
    %vm38 = vcmp.eq.s32.totalorder %v34, %v37
    %v39 = vsel %vm38, %v18, 0.0
    %v40 = vsel %vm20, %v39, 0.0
    %41 = vadd.xlane.f32.xlu0 %v40
    %v42 = vpop.xlane.xlu0 %41
    %v43 = vsub.f32 %v32, %v42
    %v44 = vlaneseq
    %v45 = vshrl.u32 %v44, 7
    %s46 = smul.u32 0, 8
    %v47 = vstv %s46
    %v48 = vadd.s32 %v45, %v47
    %vm49 = vcmp.lt.s32.totalorder %v48, 8
    %v50 = vsel %vm49, %v43, 0.0
    %s51 = sld [smem:[#allocation2]]
    %vm52 = vcmask 7168
    %v53 = vsel %vm52, %v50, 0.0
    %54 = vadd.xlane.f32.xlu0 %v53
    %v55 = vpop.xlane.xlu0 %54
    %v56 = vrot.slane %v55, 4
    %v57 = vadd.f32 %v55, %v56
    %v58 = vrot.slane %v57, 2
    %v59 = vadd.f32 %v57, %v58
    %v60 = vrot.slane %v59, 1
    %v61 = vadd.f32 %v59, %v60
    %s62 = vtos %v61
    %s63 = smul.f32 %s62, 0.125
    %s64 = sadd.f32 %s51, %s63
    %s65 = scalar_lea.smem [#allocation2], 0
    %66 = sst [smem:[%s65]] %s64
    // Predicated region
    $region14: #{tpu_custom_call.1} parent=1 // pred_check
      _
    $region15: #{tpu_custom_call.1} parent=1 // pred_check_branch
      %68 = sbr.rel (0) target = $region17
    $region16: #{tpu_custom_call.1} parent=1 // pred_region
      %s70 = ssub.s32 16, 16
      %71 = vsyncadd [#allocation3], %s70
      %74 = dma.smem_to_hbm [#allocation2], 16, %s2, [#allocation3]
    $region17: #{tpu_custom_call.1} parent=1 // pred_fallthru
      _
    // Predicated region
    $region18: #{tpu_custom_call.1} parent=1 // pred_check
      _
    $region19: #{tpu_custom_call.1} parent=1 // pred_check_branch
      %76 = sbr.rel (0) target = $region21
    $region20: #{tpu_custom_call.1} parent=1 // pred_region
      %77 = dma.done [#allocation3], 16
    $region21: #{tpu_custom_call.1} parent=1 // pred_fallthru
      _
    %78 = sfence
    %79 = vsyncpa [#allocation3], 1

</llo_original>
